<compile_context>
chip_gen: v7x
topology: tpu7x:2x2x1
jax: 0.10.0
libtpu: 0.0.40
codegen_flags: <defaults>
</compile_context>

<pallas_src>
import jax
import jax.numpy as jnp
from jax.experimental import pallas as pl
from jax.experimental.pallas import tpu as pltpu


def _round_up(x, m):
    return ((x + m - 1) // m) * m


def _mlp_kernel(x_ref,
                w1_ref, b1_ref,
                w2_ref, b2_ref,
                w3_ref, b3_ref,
                w4_ref, b4_ref,
                o_ref):
    """Fused MLP: (Linear+BN+ReLU) x3 -> Linear -> row-wise L2 normalize.

    BN (eval mode) is pre-folded into the Linear weights/biases.  Weights /
    x may be bf16 (MXU inputs); accumulation and elementwise math are f32.
    """
    h = jnp.dot(x_ref[...], w1_ref[...],
                preferred_element_type=jnp.float32) + b1_ref[...]
    h = jnp.maximum(h, 0.0)

    h = jnp.dot(h.astype(w2_ref.dtype), w2_ref[...],
                preferred_element_type=jnp.float32) + b2_ref[...]
    h = jnp.maximum(h, 0.0)

    h = jnp.dot(h.astype(w3_ref.dtype), w3_ref[...],
                preferred_element_type=jnp.float32) + b3_ref[...]
    h = jnp.maximum(h, 0.0)

    logits = jnp.dot(h.astype(w4_ref.dtype), w4_ref[...],
                     preferred_element_type=jnp.float32) + b4_ref[...]

    # F.normalize(p=2, dim=1): x / max(||x||_2, 1e-12)
    #   == x * rsqrt(max(sum(x^2), 1e-24))   (sqrt is monotone -> identical)
    # rsqrt goes to the otherwise-idle EUP slot; the divide becomes a mul.
    sumsq = jnp.sum(logits * logits, axis=1, keepdims=True)
    inv = jax.lax.rsqrt(jnp.maximum(sumsq, 1e-24))
    o_ref[...] = (logits * inv).astype(o_ref.dtype)


def fold_bn_params(raw, eps=1e-5):
    """Fold eval-mode BatchNorm1d into the preceding Linear.

      y = ((x @ w + b) - mean) / sqrt(var + eps) * gamma + beta
        =  x @ (w * s) + (b * s + t)
      with s = gamma / sqrt(var + eps),  t = beta - mean * s
    """
    p = {}
    for li in (1, 2, 3):
        s = raw[f"gamma{li}"] / jnp.sqrt(raw[f"var{li}"] + eps)
        t = raw[f"beta{li}"] - raw[f"mean{li}"] * s
        p[f"w{li}"] = raw[f"w{li}"] * s            # (fan_in, fan_out) * (1, fan_out)
        p[f"b{li}"] = raw[f"b{li}"] * s + t
    p["w4"] = raw["w4"]
    p["b4"] = raw["b4"]
    return p


def nn_forward(x, folded, *, tile_n=2048, matmul_dtype=jnp.float32):
    """x: (N, in_feats) float32.  folded: dict of BN-folded Linear params.

    matmul_dtype: dtype of the MXU inputs (x + weights).  Use jnp.bfloat16 on
    v6e/v7x to halve x DMA bytes and double MXU rate; accumulation stays f32.
    """
    N, in_feats = x.shape
    out_feats = folded["w4"].shape[1]

    # Sublane granule for the row-tile: 8 for f32 blocks, 16 when the x block
    # is bf16 (sub-32-bit dtypes pack 2 rows per sublane).
    gran = 8 if jnp.dtype(matmul_dtype).itemsize >= 4 else 16
    n_g = _round_up(N, gran)

    # Row tile: big enough to amortize the ~0.35 us per-grid-step overhead and
    # fill the MXU M-dim, capped by the batch.  When the batch is moderate,
    # cap at ~half the batch so the grid has >=2 steps and the "parallel" row
    # axis shards across v7x's 2 TensorCores.  VMEM footprint at tile=2048 is
    # ~1.5 MB double-buffered — comfortably inside v7x's 64 MiB budget.
    tile = min(tile_n, n_g)
    if n_g >= 2 * gran:
        tile = min(tile, _round_up(pl.cdiv(n_g, 2), gran))
    tile = max(tile, gran)

    grid = (pl.cdiv(N, tile),)   # non-dividing last block handled by Pallas

    # Cast MXU inputs; biases (and all elementwise math) stay f32.
    xc = x.astype(matmul_dtype)
    args = (
        xc,
        folded["w1"].astype(matmul_dtype), folded["b1"].astype(jnp.float32),
        folded["w2"].astype(matmul_dtype), folded["b2"].astype(jnp.float32),
        folded["w3"].astype(matmul_dtype), folded["b3"].astype(jnp.float32),
        folded["w4"].astype(matmul_dtype), folded["b4"].astype(jnp.float32),
    )

    row_spec = lambda nf: pl.BlockSpec((tile, nf), lambda i: (i, 0))
    full_spec = lambda shp: pl.BlockSpec(shp, lambda i: (0, 0))
    in_specs = [row_spec(in_feats)] + [full_spec(a.shape) for a in args[1:]]

    out = pl.pallas_call(
        _mlp_kernel,
        out_shape=jax.ShapeDtypeStruct((N, out_feats), jnp.float32),
        grid_spec=pltpu.PrefetchScalarGridSpec(
            num_scalar_prefetch=0,
            grid=grid,
            in_specs=in_specs,
            # Output block's last dim equals the full array dim: legal and
            # 1x writeback bytes (vs. the previous 16x zero-padded slab).
            out_specs=row_spec(out_feats),
        ),
        compiler_params=pltpu.CompilerParams(
            # Row axis is independent -> shards across v7x's 2 TensorCores.
            dimension_semantics=("parallel",)),
    )(*args)

    return out


def _init_params(key, in_feats, h_feats, out_feats):
    """Deterministic synthetic raw parameters matching the PyTorch module."""
    dims = [(in_feats, h_feats), (h_feats, 2 * h_feats),
            (2 * h_feats, h_feats), (h_feats, out_feats)]
    keys = jax.random.split(key, 20)
    p = {}
    ki = 0
    for li, (fan_in, fan_out) in enumerate(dims, start=1):
        bound = 1.0 / jnp.sqrt(fan_in)
        p[f"w{li}"] = jax.random.uniform(
            keys[ki], (fan_in, fan_out), jnp.float32, -bound, bound); ki += 1
        p[f"b{li}"] = jax.random.uniform(
            keys[ki], (1, fan_out), jnp.float32, -bound, bound); ki += 1
        if li < 4:  # BatchNorm1d after the first three Linears (eval stats)
            p[f"gamma{li}"] = 1.0 + 0.1 * jax.random.normal(
                keys[ki], (1, fan_out), jnp.float32); ki += 1
            p[f"beta{li}"] = 0.1 * jax.random.normal(
                keys[ki], (1, fan_out), jnp.float32); ki += 1
            p[f"mean{li}"] = 0.05 * jax.random.normal(
                keys[ki], (1, fan_out), jnp.float32); ki += 1
            p[f"var{li}"] = 1.0 + 0.1 * jax.random.uniform(
                keys[ki], (1, fan_out), jnp.float32); ki += 1
    return p


def _ref_forward(x, raw, eps=1e-5):
    """Pure-JAX reference with explicit (unfolded) eval-mode BatchNorm."""
    h = x
    for li in (1, 2, 3):
        h = h @ raw[f"w{li}"] + raw[f"b{li}"]
        h = (h - raw[f"mean{li}"]) / jnp.sqrt(raw[f"var{li}"] + eps)
        h = h * raw[f"gamma{li}"] + raw[f"beta{li}"]
        h = jnp.maximum(h, 0.0)
    logits = h @ raw["w4"] + raw["b4"]
    norm = jnp.sqrt(jnp.sum(logits * logits, axis=1, keepdims=True))
    return logits / jnp.maximum(norm, 1e-12)


if __name__ == "__main__":
    # Small shapes consistent with the module; N is deliberately not a
    # multiple of 8 to exercise the non-dividing last-block path, and small
    # enough that the ">=2 grid steps for v7x" cap kicks in.
    N, in_feats, h_feats, out_feats = 100, 16, 32, 8
    key = jax.random.PRNGKey(0)
    kx, kp = jax.random.split(key)
    x = jax.random.normal(kx, (N, in_feats), jnp.float32)
    raw = _init_params(kp, in_feats, h_feats, out_feats)
    folded = fold_bn_params(raw)
    ref = _ref_forward(x, raw)

    # f32 path (default; v5e-friendly): tight parity with the reference.
    out = jax.block_until_ready(nn_forward(x, folded))
    assert out.shape == (N, out_feats)
    assert jnp.max(jnp.abs(out - ref)) < 1e-4

    # bf16 MXU-input path (v6e/v7x bandwidth win): looser tolerance.
    out_bf16 = jax.block_until_ready(
        nn_forward(x, folded, matmul_dtype=jnp.bfloat16))
    assert out_bf16.shape == (N, out_feats)
    assert jnp.max(jnp.abs(out_bf16 - ref)) < 5e-2

    print("KERNEL_OK")
</pallas_src>

<mosaic_0001>
module attributes {stable_mosaic.version = 11 : i64} {
  func.func @_mlp_kernel(%arg0: i32, %arg1: memref<56x16xf32, #tpu.memory_space<vmem>>, %arg2: memref<16x32xf32, #tpu.memory_space<vmem>>, %arg3: memref<1x32xf32, #tpu.memory_space<vmem>>, %arg4: memref<32x64xf32, #tpu.memory_space<vmem>>, %arg5: memref<1x64xf32, #tpu.memory_space<vmem>>, %arg6: memref<64x32xf32, #tpu.memory_space<vmem>>, %arg7: memref<1x32xf32, #tpu.memory_space<vmem>>, %arg8: memref<32x8xf32, #tpu.memory_space<vmem>>, %arg9: memref<1x8xf32, #tpu.memory_space<vmem>>, %arg10: memref<56x8xf32, #tpu.memory_space<vmem>>) attributes {dimension_semantics = [#tpu.dimension_semantics<parallel>], iteration_bounds = array<i64: 2>, scalar_prefetch = 0 : i64, scratch_operands = 0 : i64, tpu.core_type = #tpu.core_type<tc>, window_params = [{transform_indices = @transform_0, window_bounds = array<i64: 56, 16>}, {pipeline_mode = #tpu.pipeline_mode<synchronous>, transform_indices = @transform_1, window_bounds = array<i64: 16, 32>}, {pipeline_mode = #tpu.pipeline_mode<synchronous>, transform_indices = @transform_2, window_bounds = array<i64: 1, 32>}, {pipeline_mode = #tpu.pipeline_mode<synchronous>, transform_indices = @transform_3, window_bounds = array<i64: 32, 64>}, {pipeline_mode = #tpu.pipeline_mode<synchronous>, transform_indices = @transform_4, window_bounds = array<i64: 1, 64>}, {pipeline_mode = #tpu.pipeline_mode<synchronous>, transform_indices = @transform_5, window_bounds = array<i64: 64, 32>}, {pipeline_mode = #tpu.pipeline_mode<synchronous>, transform_indices = @transform_6, window_bounds = array<i64: 1, 32>}, {pipeline_mode = #tpu.pipeline_mode<synchronous>, transform_indices = @transform_7, window_bounds = array<i64: 32, 8>}, {pipeline_mode = #tpu.pipeline_mode<synchronous>, transform_indices = @transform_8, window_bounds = array<i64: 1, 8>}, {transform_indices = @transform_9, window_bounds = array<i64: 56, 8>}]} {
    %c0 = arith.constant 0 : index
    %c0_0 = arith.constant 0 : index
    %0 = vector.load %arg1[%c0, %c0_0] : memref<56x16xf32, #tpu.memory_space<vmem>>, vector<56x16xf32>
    %c0_1 = arith.constant 0 : index
    %c0_2 = arith.constant 0 : index
    %1 = vector.load %arg2[%c0_1, %c0_2] : memref<16x32xf32, #tpu.memory_space<vmem>>, vector<16x32xf32>
    %cst = arith.constant dense<0.000000e+00> : vector<56x32xf32>
    %2 = tpu.matmul %0, %1, %cst {dimension_numbers = #tpu.dot_dimension_numbers<[1], [0], [0], [1], [0, 0, 1, 1], [], []>} : vector<56x16xf32>, vector<16x32xf32>, vector<56x32xf32> -> vector<56x32xf32>
    %c0_3 = arith.constant 0 : index
    %c0_4 = arith.constant 0 : index
    %3 = vector.load %arg3[%c0_3, %c0_4] : memref<1x32xf32, #tpu.memory_space<vmem>>, vector<1x32xf32>
    %4 = vector.broadcast %3 : vector<1x32xf32> to vector<56x32xf32>
    %5 = arith.addf %2, %4 : vector<56x32xf32>
    %cst_5 = arith.constant 0.000000e+00 : f32
    %6 = vector.broadcast %cst_5 : f32 to vector<56x32xf32>
    %7 = arith.maximumf %5, %6 : vector<56x32xf32>
    %c0_6 = arith.constant 0 : index
    %c0_7 = arith.constant 0 : index
    %8 = vector.load %arg4[%c0_6, %c0_7] : memref<32x64xf32, #tpu.memory_space<vmem>>, vector<32x64xf32>
    %cst_8 = arith.constant dense<0.000000e+00> : vector<56x64xf32>
    %9 = tpu.matmul %7, %8, %cst_8 {dimension_numbers = #tpu.dot_dimension_numbers<[1], [0], [0], [1], [0, 0, 1, 1], [], []>} : vector<56x32xf32>, vector<32x64xf32>, vector<56x64xf32> -> vector<56x64xf32>
    %c0_9 = arith.constant 0 : index
    %c0_10 = arith.constant 0 : index
    %10 = vector.load %arg5[%c0_9, %c0_10] : memref<1x64xf32, #tpu.memory_space<vmem>>, vector<1x64xf32>
    %11 = vector.broadcast %10 : vector<1x64xf32> to vector<56x64xf32>
    %12 = arith.addf %9, %11 : vector<56x64xf32>
    %cst_11 = arith.constant 0.000000e+00 : f32
    %13 = vector.broadcast %cst_11 : f32 to vector<56x64xf32>
    %14 = arith.maximumf %12, %13 : vector<56x64xf32>
    %c0_12 = arith.constant 0 : index
    %c0_13 = arith.constant 0 : index
    %15 = vector.load %arg6[%c0_12, %c0_13] : memref<64x32xf32, #tpu.memory_space<vmem>>, vector<64x32xf32>
    %cst_14 = arith.constant dense<0.000000e+00> : vector<56x32xf32>
    %16 = tpu.matmul %14, %15, %cst_14 {dimension_numbers = #tpu.dot_dimension_numbers<[1], [0], [0], [1], [0, 0, 1, 1], [], []>} : vector<56x64xf32>, vector<64x32xf32>, vector<56x32xf32> -> vector<56x32xf32>
    %c0_15 = arith.constant 0 : index
    %c0_16 = arith.constant 0 : index
    %17 = vector.load %arg7[%c0_15, %c0_16] : memref<1x32xf32, #tpu.memory_space<vmem>>, vector<1x32xf32>
    %18 = vector.broadcast %17 : vector<1x32xf32> to vector<56x32xf32>
    %19 = arith.addf %16, %18 : vector<56x32xf32>
    %cst_17 = arith.constant 0.000000e+00 : f32
    %20 = vector.broadcast %cst_17 : f32 to vector<56x32xf32>
    %21 = arith.maximumf %19, %20 : vector<56x32xf32>
    %c0_18 = arith.constant 0 : index
    %c0_19 = arith.constant 0 : index
    %22 = vector.load %arg8[%c0_18, %c0_19] : memref<32x8xf32, #tpu.memory_space<vmem>>, vector<32x8xf32>
    %cst_20 = arith.constant dense<0.000000e+00> : vector<56x8xf32>
    %23 = tpu.matmul %21, %22, %cst_20 {dimension_numbers = #tpu.dot_dimension_numbers<[1], [0], [0], [1], [0, 0, 1, 1], [], []>} : vector<56x32xf32>, vector<32x8xf32>, vector<56x8xf32> -> vector<56x8xf32>
    %c0_21 = arith.constant 0 : index
    %c0_22 = arith.constant 0 : index
    %24 = vector.load %arg9[%c0_21, %c0_22] : memref<1x8xf32, #tpu.memory_space<vmem>>, vector<1x8xf32>
    %25 = vector.broadcast %24 : vector<1x8xf32> to vector<56x8xf32>
    %26 = arith.addf %23, %25 : vector<56x8xf32>
    %27 = arith.mulf %26, %26 : vector<56x8xf32>
    %cst_23 = arith.constant dense<0.000000e+00> : vector<56xf32>
    %28 = vector.multi_reduction <add>, %27, %cst_23 [1] : vector<56x8xf32> to vector<56xf32>
    %29 = vector.shape_cast %28 : vector<56xf32> to vector<56x1xf32>
    %cst_24 = arith.constant 1.000000e-24 : f32
    %30 = vector.broadcast %cst_24 : f32 to vector<56x1xf32>
    %31 = arith.maximumf %29, %30 : vector<56x1xf32>
    %32 = math.rsqrt %31 : vector<56x1xf32>
    %33 = vector.broadcast %32 : vector<56x1xf32> to vector<56x8xf32>
    %34 = arith.mulf %26, %33 : vector<56x8xf32>
    %c0_25 = arith.constant 0 : index
    %c0_26 = arith.constant 0 : index
    %35 = vector.load %arg10[%c0_25, %c0_26] : memref<56x8xf32, #tpu.memory_space<vmem>>, vector<56x8xf32>
    tpu.vector_store %arg10[%c0_25, %c0_26], %34 {strides = array<i32>} : memref<56x8xf32, #tpu.memory_space<vmem>>, vector<56x8xf32>,
    return
  }
  func.func @transform_0(%arg0: i32) -> (i32, i32) {
    %c0_i32 = arith.constant 0 : i32
    %c0_i32_0 = arith.constant 0 : i32
    return %arg0, %c0_i32 : i32, i32
  }
  func.func @transform_1(%arg0: i32) -> (i32, i32) {
    %c0_i32 = arith.constant 0 : i32
    %c0_i32_0 = arith.constant 0 : i32
    %c0_i32_1 = arith.constant 0 : i32
    return %c0_i32, %c0_i32_0 : i32, i32
  }
  func.func @transform_2(%arg0: i32) -> (i32, i32) {
    %c0_i32 = arith.constant 0 : i32
    %c0_i32_0 = arith.constant 0 : i32
    %c0_i32_1 = arith.constant 0 : i32
    return %c0_i32, %c0_i32_0 : i32, i32
  }
  func.func @transform_3(%arg0: i32) -> (i32, i32) {
    %c0_i32 = arith.constant 0 : i32
    %c0_i32_0 = arith.constant 0 : i32
    %c0_i32_1 = arith.constant 0 : i32
    return %c0_i32, %c0_i32_0 : i32, i32
  }
  func.func @transform_4(%arg0: i32) -> (i32, i32) {
    %c0_i32 = arith.constant 0 : i32
    %c0_i32_0 = arith.constant 0 : i32
    %c0_i32_1 = arith.constant 0 : i32
    return %c0_i32, %c0_i32_0 : i32, i32
  }
  func.func @transform_5(%arg0: i32) -> (i32, i32) {
    %c0_i32 = arith.constant 0 : i32
    %c0_i32_0 = arith.constant 0 : i32
    %c0_i32_1 = arith.constant 0 : i32
    return %c0_i32, %c0_i32_0 : i32, i32
  }
  func.func @transform_6(%arg0: i32) -> (i32, i32) {
    %c0_i32 = arith.constant 0 : i32
    %c0_i32_0 = arith.constant 0 : i32
    %c0_i32_1 = arith.constant 0 : i32
    return %c0_i32, %c0_i32_0 : i32, i32
  }
  func.func @transform_7(%arg0: i32) -> (i32, i32) {
    %c0_i32 = arith.constant 0 : i32
    %c0_i32_0 = arith.constant 0 : i32
    %c0_i32_1 = arith.constant 0 : i32
    return %c0_i32, %c0_i32_0 : i32, i32
  }
  func.func @transform_8(%arg0: i32) -> (i32, i32) {
    %c0_i32 = arith.constant 0 : i32
    %c0_i32_0 = arith.constant 0 : i32
    %c0_i32_1 = arith.constant 0 : i32
    return %c0_i32, %c0_i32_0 : i32, i32
  }
  func.func @transform_9(%arg0: i32) -> (i32, i32) {
    %c0_i32 = arith.constant 0 : i32
    %c0_i32_0 = arith.constant 0 : i32
    return %arg0, %c0_i32 : i32, i32
  }
}

</mosaic_0001>

<llo_original>
// kernel: tpu_custom_call.1
$region0: #{tpu_custom_call.1}
  #allocation0 [shape = 'u32[]', space=smem, size = 0x4, offset = 0x4, fixed_abs, tag = 'smem constant byte address 0x4 - core index']
  #allocation1 [shape = 'u32[144,128]{1,0:T(1,128)}', space=vmem, size = 0x12000, scoped, tag = 'internal scratch']
  %s0 = inlined_call_operand.vmem [shape: f32[100,16], index: 0, kind: input, shape index: {}]
  %s1 = inlined_call_operand.vmem [shape: f32[16,32], index: 1, kind: input, shape index: {}]
  %s2 = inlined_call_operand.vmem [shape: f32[1,32], index: 2, kind: input, shape index: {}]
  %s3 = inlined_call_operand.vmem [shape: f32[32,64], index: 3, kind: input, shape index: {}]
  %s4 = inlined_call_operand.vmem [shape: f32[1,64], index: 4, kind: input, shape index: {}]
  %s5 = inlined_call_operand.vmem [shape: f32[64,32], index: 5, kind: input, shape index: {}]
  %s6 = inlined_call_operand.vmem [shape: f32[1,32], index: 6, kind: input, shape index: {}]
  %s7 = inlined_call_operand.vmem [shape: f32[32,8], index: 7, kind: input, shape index: {}]
  %s8 = inlined_call_operand.vmem [shape: f32[1,8], index: 8, kind: input, shape index: {}]
  %s9 = inlined_call_operand.vmem [shape: f32[100,8], index: 9, kind: output, shape index: {}]
  %s10 = sld [smem:[#allocation0]]
  $region117: #{tpu_custom_call.1} parent=0
    _
  %s12 = ssub.s32 1, %s10
  %s13 = scalar_select 0, %s12, %s10
  $region1: #{tpu_custom_call.1} parent=0
    #allocation2 [shape = 'u8[57344]{0}', space=vmem, size = 0xe000, scoped, tag = 'output window, operand 0']
    loop: start=0, step=1, limit=4
    $region2: #{tpu_custom_call.1} parent=1 // loop_pre_header
      _
    $region3: #{tpu_custom_call.1} parent=1 // loop_header
      %s15 = sphi 0, %s19
      %p16 = scmp.ge.s32.totalorder %s15, 4
      %s25 = sphi 0, %s27
      %s28 = sphi 0, %s25
      %s29 = sphi 0, %s28
      %s45 = sphi 0, %s29
      %s49 = sphi 0, %s49
      %s51 = sphi 0, %s49
      %s52 = sphi 0, %s51
      %s66 = sphi 0, %s52
      %s70 = sphi 0, %s70
      %s72 = sphi 0, %s70
      %s73 = sphi 0, %s72
      %s87 = sphi 0, %s73
      %s91 = sphi 0, %s91
      %s93 = sphi 0, %s91
      %s94 = sphi 0, %s93
      %s108 = sphi 0, %s94
      %s112 = sphi 0, %s112
      %s114 = sphi 0, %s112
      %s115 = sphi 0, %s114
      %s129 = sphi 0, %s115
      %s133 = sphi 0, %s133
      %s135 = sphi 0, %s133
      %s136 = sphi 0, %s135
      %s150 = sphi 0, %s136
      %s154 = sphi 0, %s154
      %s156 = sphi 0, %s154
      %s157 = sphi 0, %s156
      %s171 = sphi 0, %s157
      %s175 = sphi 0, %s175
      %s177 = sphi 0, %s175
      %s178 = sphi 0, %s177
      %s192 = sphi 0, %s178
      %s196 = sphi 0, %s196
      %s198 = sphi 0, %s196
      %s199 = sphi 0, %s198
      %s213 = sphi 0, %s199
      %s219 = sphi 0, %s221
      %s222 = sphi 0, %s219
      %s223 = sphi 0, %s222
      %s239 = sphi 0, %s223
    $region4: #{tpu_custom_call.1} parent=1 // loop_header_branch
      %18 = sbr.rel (%p16) target = $region8
    $region5: #{tpu_custom_call.1} parent=1 // loop_body
      %s20 = ssub.s32 %s15, 1
      %s21 = ssub.s32 %s15, 2
      %s22 = sadd.s32 %s15, 1
      %s23 = ssub.s32 %s15, %s22
      %p24 = scmp.eq.s32.totalorder %s23, 0
      %s26 = sadd.s32 %s25, 1
      %s27 = scalar_select %p24, %s25, %s26
      %p30 = pneg %p24
      %p31 = scmp.eq.s32.totalorder %s15, 1
      %p32 = por %p30, %p31
      %p33 = scmp.ne.s32.totalorder %s25, %s28
      %p34 = scmp.eq.s32.totalorder %s15, 0
      %p35 = por %p33, %p34
      %p36 = scmp.ne.s32.totalorder %s25, %s28
      %p37 = scmp.eq.s32.totalorder %s20, 1
      %p38 = por %p36, %p37
      %p39 = scmp.ne.s32.totalorder %s28, %s29
      %p40 = scmp.eq.s32.totalorder %s20, 0
      %p41 = por %p39, %p40
      %p42 = scmp.ne.s32.totalorder %s28, %s29
      %p43 = scmp.eq.s32.totalorder %s21, 1
      %p44 = por %p42, %p43
      %p46 = scmp.ne.s32.totalorder %s29, %s45
      %p47 = scmp.eq.s32.totalorder %s21, 0
      %p48 = por %p46, %p47
      %s50 = sadd.s32 %s49, 1
      %p53 = scmp.eq.s32.totalorder %s15, 1
      %p54 = scmp.ne.s32.totalorder %s49, %s51
      %p55 = scmp.eq.s32.totalorder %s15, 0
      %p56 = por %p54, %p55
      %p57 = scmp.ne.s32.totalorder %s49, %s51
      %p58 = scmp.eq.s32.totalorder %s20, 1
      %p59 = por %p57, %p58
      %p60 = scmp.ne.s32.totalorder %s51, %s52
      %p61 = scmp.eq.s32.totalorder %s20, 0
      %p62 = por %p60, %p61
      %p63 = scmp.ne.s32.totalorder %s51, %s52
      %p64 = scmp.eq.s32.totalorder %s21, 1
      %p65 = por %p63, %p64
      %p67 = scmp.ne.s32.totalorder %s52, %s66
      %p68 = scmp.eq.s32.totalorder %s21, 0
      %p69 = por %p67, %p68
      %s71 = sadd.s32 %s70, 1
      %p74 = scmp.eq.s32.totalorder %s15, 1
      %p75 = scmp.ne.s32.totalorder %s70, %s72
      %p76 = scmp.eq.s32.totalorder %s15, 0
      %p77 = por %p75, %p76
      %p78 = scmp.ne.s32.totalorder %s70, %s72
      %p79 = scmp.eq.s32.totalorder %s20, 1
      %p80 = por %p78, %p79
      %p81 = scmp.ne.s32.totalorder %s72, %s73
      %p82 = scmp.eq.s32.totalorder %s20, 0
      %p83 = por %p81, %p82
      %p84 = scmp.ne.s32.totalorder %s72, %s73
      %p85 = scmp.eq.s32.totalorder %s21, 1
      %p86 = por %p84, %p85
      %p88 = scmp.ne.s32.totalorder %s73, %s87
      %p89 = scmp.eq.s32.totalorder %s21, 0
      %p90 = por %p88, %p89
      %s92 = sadd.s32 %s91, 1
      %p95 = scmp.eq.s32.totalorder %s15, 1
      %p96 = scmp.ne.s32.totalorder %s91, %s93
      %p97 = scmp.eq.s32.totalorder %s15, 0
      %p98 = por %p96, %p97
      %p99 = scmp.ne.s32.totalorder %s91, %s93
      %p100 = scmp.eq.s32.totalorder %s20, 1
      %p101 = por %p99, %p100
      %p102 = scmp.ne.s32.totalorder %s93, %s94
      %p103 = scmp.eq.s32.totalorder %s20, 0
      %p104 = por %p102, %p103
      %p105 = scmp.ne.s32.totalorder %s93, %s94
      %p106 = scmp.eq.s32.totalorder %s21, 1
      %p107 = por %p105, %p106
      %p109 = scmp.ne.s32.totalorder %s94, %s108
      %p110 = scmp.eq.s32.totalorder %s21, 0
      %p111 = por %p109, %p110
      %s113 = sadd.s32 %s112, 1
      %p116 = scmp.eq.s32.totalorder %s15, 1
      %p117 = scmp.ne.s32.totalorder %s112, %s114
      %p118 = scmp.eq.s32.totalorder %s15, 0
      %p119 = por %p117, %p118
      %p120 = scmp.ne.s32.totalorder %s112, %s114
      %p121 = scmp.eq.s32.totalorder %s20, 1
      %p122 = por %p120, %p121
      %p123 = scmp.ne.s32.totalorder %s114, %s115
      %p124 = scmp.eq.s32.totalorder %s20, 0
      %p125 = por %p123, %p124
      %p126 = scmp.ne.s32.totalorder %s114, %s115
      %p127 = scmp.eq.s32.totalorder %s21, 1
      %p128 = por %p126, %p127
      %p130 = scmp.ne.s32.totalorder %s115, %s129
      %p131 = scmp.eq.s32.totalorder %s21, 0
      %p132 = por %p130, %p131
      %s134 = sadd.s32 %s133, 1
      %p137 = scmp.eq.s32.totalorder %s15, 1
      %p138 = scmp.ne.s32.totalorder %s133, %s135
      %p139 = scmp.eq.s32.totalorder %s15, 0
      %p140 = por %p138, %p139
      %p141 = scmp.ne.s32.totalorder %s133, %s135
      %p142 = scmp.eq.s32.totalorder %s20, 1
      %p143 = por %p141, %p142
      %p144 = scmp.ne.s32.totalorder %s135, %s136
      %p145 = scmp.eq.s32.totalorder %s20, 0
      %p146 = por %p144, %p145
      %p147 = scmp.ne.s32.totalorder %s135, %s136
      %p148 = scmp.eq.s32.totalorder %s21, 1
      %p149 = por %p147, %p148
      %p151 = scmp.ne.s32.totalorder %s136, %s150
      %p152 = scmp.eq.s32.totalorder %s21, 0
      %p153 = por %p151, %p152
      %s155 = sadd.s32 %s154, 1
      %p158 = scmp.eq.s32.totalorder %s15, 1
      %p159 = scmp.ne.s32.totalorder %s154, %s156
      %p160 = scmp.eq.s32.totalorder %s15, 0
      %p161 = por %p159, %p160
      %p162 = scmp.ne.s32.totalorder %s154, %s156
      %p163 = scmp.eq.s32.totalorder %s20, 1
      %p164 = por %p162, %p163
      %p165 = scmp.ne.s32.totalorder %s156, %s157
      %p166 = scmp.eq.s32.totalorder %s20, 0
      %p167 = por %p165, %p166
      %p168 = scmp.ne.s32.totalorder %s156, %s157
      %p169 = scmp.eq.s32.totalorder %s21, 1
      %p170 = por %p168, %p169
      %p172 = scmp.ne.s32.totalorder %s157, %s171
      %p173 = scmp.eq.s32.totalorder %s21, 0
      %p174 = por %p172, %p173
      %s176 = sadd.s32 %s175, 1
      %p179 = scmp.eq.s32.totalorder %s15, 1
      %p180 = scmp.ne.s32.totalorder %s175, %s177
      %p181 = scmp.eq.s32.totalorder %s15, 0
      %p182 = por %p180, %p181
      %p183 = scmp.ne.s32.totalorder %s175, %s177
      %p184 = scmp.eq.s32.totalorder %s20, 1
      %p185 = por %p183, %p184
      %p186 = scmp.ne.s32.totalorder %s177, %s178
      %p187 = scmp.eq.s32.totalorder %s20, 0
      %p188 = por %p186, %p187
      %p189 = scmp.ne.s32.totalorder %s177, %s178
      %p190 = scmp.eq.s32.totalorder %s21, 1
      %p191 = por %p189, %p190
      %p193 = scmp.ne.s32.totalorder %s178, %s192
      %p194 = scmp.eq.s32.totalorder %s21, 0
      %p195 = por %p193, %p194
      %s197 = sadd.s32 %s196, 1
      %p200 = scmp.eq.s32.totalorder %s15, 1
      %p201 = scmp.ne.s32.totalorder %s196, %s198
      %p202 = scmp.eq.s32.totalorder %s15, 0
      %p203 = por %p201, %p202
      %p204 = scmp.ne.s32.totalorder %s196, %s198
      %p205 = scmp.eq.s32.totalorder %s20, 1
      %p206 = por %p204, %p205
      %p207 = scmp.ne.s32.totalorder %s198, %s199
      %p208 = scmp.eq.s32.totalorder %s20, 0
      %p209 = por %p207, %p208
      %p210 = scmp.ne.s32.totalorder %s198, %s199
      %p211 = scmp.eq.s32.totalorder %s21, 1
      %p212 = por %p210, %p211
      %p214 = scmp.ne.s32.totalorder %s199, %s213
      %p215 = scmp.eq.s32.totalorder %s21, 0
      %p216 = por %p214, %p215
      %s217 = ssub.s32 %s15, %s22
      %p218 = scmp.eq.s32.totalorder %s217, 0
      %s220 = sadd.s32 %s219, 1
      %s221 = scalar_select %p218, %s219, %s220
      %p224 = pneg %p218
      %p225 = scmp.eq.s32.totalorder %s15, 1
      %p226 = por %p224, %p225
      %p227 = scmp.ne.s32.totalorder %s219, %s222
      %p228 = scmp.eq.s32.totalorder %s15, 0
      %p229 = por %p227, %p228
      %p230 = scmp.ne.s32.totalorder %s219, %s222
      %p231 = scmp.eq.s32.totalorder %s20, 1
      %p232 = por %p230, %p231
      %p233 = scmp.ne.s32.totalorder %s222, %s223
      %p234 = scmp.eq.s32.totalorder %s20, 0
      %p235 = por %p233, %p234
      %p236 = scmp.ne.s32.totalorder %s222, %s223
      %p237 = scmp.eq.s32.totalorder %s21, 1
      %p238 = por %p236, %p237
      %p240 = scmp.ne.s32.totalorder %s223, %s239
      %p241 = scmp.eq.s32.totalorder %s21, 0
      %p242 = por %p240, %p241
      %p243 = scmp.le.s32.totalorder 1, %s15
      %p244 = scmp.lt.s32.totalorder %s15, 3
      %p245 = pnand %p243, %p244
      %p246 = pneg %p245
      // Predicated region
      $region9: #{tpu_custom_call.1} parent=5 // pred_check
        _
      $region10: #{tpu_custom_call.1} parent=5 // pred_check_branch
        %248 = sbr.rel (%p245) target = $region12
      $region11: #{tpu_custom_call.1} parent=5 // pred_region
        %s249 = ssub.s32 %s15, 1
        // Predicated region
        $region13: #{tpu_custom_call.1} parent=11 // pred_check
          %p250 = pneg %p62
        $region14: #{tpu_custom_call.1} parent=11 // pred_check_branch
          %252 = sbr.rel (%p250) target = $region16
        $region15: #{tpu_custom_call.1} parent=11 // pred_region
          _
        $region16: #{tpu_custom_call.1} parent=11 // pred_fallthru
          _
        // Predicated region
        $region17: #{tpu_custom_call.1} parent=11 // pred_check
          %p253 = pneg %p83
        $region18: #{tpu_custom_call.1} parent=11 // pred_check_branch
          %255 = sbr.rel (%p253) target = $region20
        $region19: #{tpu_custom_call.1} parent=11 // pred_region
          _
        $region20: #{tpu_custom_call.1} parent=11 // pred_fallthru
          _
        // Predicated region
        $region21: #{tpu_custom_call.1} parent=11 // pred_check
          %p256 = pneg %p104
        $region22: #{tpu_custom_call.1} parent=11 // pred_check_branch
          %258 = sbr.rel (%p256) target = $region24
        $region23: #{tpu_custom_call.1} parent=11 // pred_region
          _
        $region24: #{tpu_custom_call.1} parent=11 // pred_fallthru
          _
        // Predicated region
        $region25: #{tpu_custom_call.1} parent=11 // pred_check
          %p259 = pneg %p125
        $region26: #{tpu_custom_call.1} parent=11 // pred_check_branch
          %261 = sbr.rel (%p259) target = $region28
        $region27: #{tpu_custom_call.1} parent=11 // pred_region
          _
        $region28: #{tpu_custom_call.1} parent=11 // pred_fallthru
          _
        // Predicated region
        $region29: #{tpu_custom_call.1} parent=11 // pred_check
          %p262 = pneg %p146
        $region30: #{tpu_custom_call.1} parent=11 // pred_check_branch
          %264 = sbr.rel (%p262) target = $region32
        $region31: #{tpu_custom_call.1} parent=11 // pred_region
          _
        $region32: #{tpu_custom_call.1} parent=11 // pred_fallthru
          _
        // Predicated region
        $region33: #{tpu_custom_call.1} parent=11 // pred_check
          %p265 = pneg %p167
        $region34: #{tpu_custom_call.1} parent=11 // pred_check_branch
          %267 = sbr.rel (%p265) target = $region36
        $region35: #{tpu_custom_call.1} parent=11 // pred_region
          _
        $region36: #{tpu_custom_call.1} parent=11 // pred_fallthru
          _
        // Predicated region
        $region37: #{tpu_custom_call.1} parent=11 // pred_check
          %p268 = pneg %p188
        $region38: #{tpu_custom_call.1} parent=11 // pred_check_branch
          %270 = sbr.rel (%p268) target = $region40
        $region39: #{tpu_custom_call.1} parent=11 // pred_region
          _
        $region40: #{tpu_custom_call.1} parent=11 // pred_fallthru
          _
        // Predicated region
        $region41: #{tpu_custom_call.1} parent=11 // pred_check
          %p271 = pneg %p209
        $region42: #{tpu_custom_call.1} parent=11 // pred_check_branch
          %273 = sbr.rel (%p271) target = $region44
        $region43: #{tpu_custom_call.1} parent=11 // pred_region
          _
        $region44: #{tpu_custom_call.1} parent=11 // pred_fallthru
          _
      $region12: #{tpu_custom_call.1} parent=5 // pred_fallthru
        _
      %p274 = scmp.lt.s32.totalorder %s15, 2
      // Predicated region
      $region45: #{tpu_custom_call.1} parent=5 // pred_check
        %p275 = pneg %p274
      $region46: #{tpu_custom_call.1} parent=5 // pred_check_branch
        %277 = sbr.rel (%p275) target = $region48
      $region47: #{tpu_custom_call.1} parent=5 // pred_region
        // Predicated region
        $region49: #{tpu_custom_call.1} parent=47 // pred_check
          %p278 = pneg %p35
        $region50: #{tpu_custom_call.1} parent=47 // pred_check_branch
          %280 = sbr.rel (%p278) target = $region52
        $region51: #{tpu_custom_call.1} parent=47 // pred_region
          %s281 = smul.u32 7, %s15
          %s282 = ssub.s32 13, %s281
          %p283 = scmp.lt.s32.totalorder %s282, 7
          %s284 = scalar_select %p283, %s282, 7
          %s285 = smul.u32 128, %s284
          %p286 = scmp.lt.s32.totalorder %s281, 12
          %s287 = scalar_select %p286, %s281, 12
          %s288 = smul.addr %s287, 8
          %s289 = scalar_lea.vmem %s0, %s288
          %s290 = smul.u32 7, %s15
          %s291 = ssub.s32 13, %s290
          %p292 = scmp.lt.s32.totalorder %s291, 7
          %s293 = scalar_select %p292, %s291, 7
          %s294 = smul.u32 128, %s293
        $region52: #{tpu_custom_call.1} parent=47 // pred_fallthru
          _
      $region48: #{tpu_custom_call.1} parent=5 // pred_fallthru
        _
      %p295 = scmp.le.s32.totalorder 1, %s15
      %p296 = scmp.lt.s32.totalorder %s15, 3
      %p297 = pnand %p295, %p296
      %p298 = pneg %p297
      // Predicated region
      $region53: #{tpu_custom_call.1} parent=5 // pred_check
        _
      $region54: #{tpu_custom_call.1} parent=5 // pred_check_branch
        %300 = sbr.rel (%p297) target = $region56
      $region55: #{tpu_custom_call.1} parent=5 // pred_region
        %s301 = ssub.s32 %s15, 1
        %s302 = smul.u32 7, %s20
        %s303 = ssub.s32 13, %s302
        %p304 = scmp.lt.s32.totalorder %s303, 7
        %s305 = scalar_select %p304, %s303, 7
        %s306 = smul.u32 128, %s305
        %p307 = scmp.lt.s32.totalorder %s302, 12
        %s308 = scalar_select %p307, %s302, 12
        %s309 = smul.addr %s308, 8
        %s310 = scalar_lea.vmem %s0, %s309
        %p311 = pneg %p41
        %p312 = pneg %p38
        %p313 = pneg %p62
        %p314 = pneg %p59
        %p315 = pneg %p83
        %p316 = pneg %p80
        %p317 = pneg %p104
        %p318 = pneg %p101
        %p319 = pneg %p125
        %p320 = pneg %p122
        %p321 = pneg %p146
        %p322 = pneg %p143
        %p323 = pneg %p167
        %p324 = pneg %p164
        %p325 = pneg %p188
        %p326 = pneg %p185
        %p327 = pneg %p209
        %p328 = pneg %p206
        %p329 = pneg %p235
        %p330 = pneg %p232
        %s331 = sand.u32 %s222, 1
        %s332 = sand.u32 %s222, 1
        %s333 = smul.addr %s332, 56
        %s334 = scalar_lea.vmem [#allocation2], %s333
        %s335 = smul.u32 7, %s20
        %s336 = ssub.s32 13, %s335
        %p337 = scmp.lt.s32.totalorder %s336, 7
        %s338 = scalar_select %p337, %s336, 7
        %s339 = smul.u32 128, %s338
        %p340 = scmp.lt.s32.totalorder %s335, 12
        %s341 = scalar_select %p340, %s335, 12
        %s342 = smul.addr %s341, 8
        %s343 = scalar_lea.vmem %s0, %s342
        %s344 = smul.u32 7, %s20
        %s345 = ssub.s32 13, %s344
        %p346 = scmp.lt.s32.totalorder %s345, 7
        %s347 = scalar_select %p346, %s345, 7
        %s348 = smul.u32 128, %s347
        %s349 = smul.u32 7, %s20
        %s350 = ssub.s32 13, %s349
        %p351 = scmp.lt.s32.totalorder %s350, 7
        %s352 = scalar_select %p351, %s350, 7
        %s353 = smul.u32 128, %s352
        %v354 = vld [vmem:[%s343] sm:$0xff]
        %v355 = vld [vmem:[%s343 + $0x8] sm:$0xff]
        %v356 = vld [vmem:[%s343 + $0x10] sm:$0xff]
        %v357 = vld [vmem:[%s343 + $0x18] sm:$0xff]
        %v358 = vld [vmem:[%s343 + $0x20] sm:$0xff]
        %v359 = vld [vmem:[%s343 + $0x28] sm:$0xff]
        %v360 = vld [vmem:[%s343 + $0x30] sm:$0xff]
        %v361 = vld [vmem:[%s1] sm:$0xff]
        %v362 = vld [vmem:[%s1 + $0x8] sm:$0xff]
        %v363 = vld [vmem:[%s2] sm:$0x1]
        %v365 = vlaneseq
        %v366 = vshrl.u32 %v365, 7
        %v367 = vsub.s32 0, %v366
        %v368 = vrot.slane %v363, %v367
        %vm370 = vcmask 130048
        %v372 = vsel %vm370, %v354, 0
        %v375 = vsel %vm370, %v355, 0
        %v378 = vsel %vm370, %v356, 0
        %v381 = vsel %vm370, %v357, 0
        %v384 = vsel %vm370, %v358, 0
        %v387 = vsel %vm370, %v359, 0
        %v390 = vsel %vm370, %v360, 0
        %392 = vmatprep.subr.mxu0 0.0
        %393 = vmatpush1.msra.mxu0 %v361
        %394 = vmatprep.subr.mxu0 0.0
        %395 = vmatpush1.msra.mxu0 %v362
        %396 = vmatprep.subr.mxu0 0.0
        %397 = vmatpush1.msra.mxu0 0.0
        %398 = vmatprep.subr.mxu0 0.0
        %399 = vmatpush1.msra.mxu0 0.0
        %400 = vmatprep.subr.mxu0 0.0
        %401 = vmatpush1.msra.mxu0 0.0
        %402 = vmatprep.subr.mxu0 0.0
        %403 = vmatpush1.msra.mxu0 0.0
        %404 = vmatprep.subr.mxu0 0.0
        %405 = vmatpush1.msra.mxu0 0.0
        %406 = vmatprep.subr.mxu0 0.0
        %407 = vmatpush1.msra.mxu0 0.0
        %408 = vmatprep.subr.mxu0 0.0
        %409 = vmatpush1.msra.mxu0 0.0
        %410 = vmatprep.subr.mxu0 0.0
        %411 = vmatpush1.msra.mxu0 0.0
        %412 = vmatprep.subr.mxu0 0.0
        %413 = vmatpush1.msra.mxu0 0.0
        %414 = vmatprep.subr.mxu0 0.0
        %415 = vmatpush1.msra.mxu0 0.0
        %416 = vmatprep.subr.mxu0 0.0
        %417 = vmatpush1.msra.mxu0 0.0
        %418 = vmatprep.subr.mxu0 0.0
        %419 = vmatpush1.msra.mxu0 0.0
        %420 = vmatprep.subr.mxu0 0.0
        %421 = vmatpush1.msra.mxu0 0.0
        %422 = vmatprep.subr.mxu0 0.0
        %423 = vmatpush1.msra.mxu0 0.0
        %424 = vmatprep.subr.mxu0 0.0
        %425 = vmatpush1.msra.mxu0 0.0
        %426 = vmatprep.subr.mxu0 0.0
        %427 = vmatpush1.msra.mxu0 0.0
        %428 = vmatprep.subr.mxu0 0.0
        %429 = vmatpush1.msra.mxu0 0.0
        %430 = vmatprep.subr.mxu0 0.0
        %431 = vmatpush1.msra.mxu0 0.0
        %432 = vmatprep.subr.mxu0 0.0
        %433 = vmatpush1.msra.mxu0 0.0
        %434 = vmatprep.subr.mxu0 0.0
        %435 = vmatpush1.msra.mxu0 0.0
        %436 = vmatprep.subr.mxu0 0.0
        %437 = vmatpush1.msra.mxu0 0.0
        %438 = vmatprep.subr.mxu0 0.0
        %439 = vmatpush1.msra.mxu0 0.0
        %440 = vmatprep.subr.mxu0 0.0
        %441 = vmatpush1.msra.mxu0 0.0
        %442 = vmatprep.subr.mxu0 0.0
        %443 = vmatpush1.msra.mxu0 0.0
        %444 = vmatprep.subr.mxu0 0.0
        %445 = vmatpush1.msra.mxu0 0.0
        %446 = vmatprep.subr.mxu0 0.0
        %447 = vmatpush1.msra.mxu0 0.0
        %448 = vmatprep.subr.mxu0 0.0
        %449 = vmatpush1.msra.mxu0 0.0
        %450 = vmatprep.subr.mxu0 0.0
        %451 = vmatpush1.msra.mxu0 0.0
        %452 = vmatprep.subr.mxu0 0.0
        %453 = vmatpush1.msra.mxu0 0.0
        %454 = vmatprep.subr.mxu0 0.0
        %455 = vmatpush1.msra.mxu0 0.0
        %456 = vmatprep.mubr.f32.mxu0 0.0
        %457 = vmatmul.mubr.f32.gmra.mrb[0].mxu0 %v372
        %v458 = vpop.f32.mrb[0].mxu0
        %v459 = vadd.f32 %v368, %v458
        %v460 = vpop.f32.mrb[0].mxu0
        %461 = vmatprep.mubr.f32.mxu0 0.0
        %462 = vmatmul.mubr.f32.gmra.mrb[0].mxu0 %v375
        %v463 = vpop.f32.mrb[0].mxu0
        %v464 = vadd.f32 %v368, %v463
        %v465 = vpop.f32.mrb[0].mxu0
        %466 = vmatprep.mubr.f32.mxu0 0.0
        %467 = vmatmul.mubr.f32.gmra.mrb[0].mxu0 %v378
        %v468 = vpop.f32.mrb[0].mxu0
        %v469 = vadd.f32 %v368, %v468
        %v470 = vpop.f32.mrb[0].mxu0
        %471 = vmatprep.mubr.f32.mxu0 0.0
        %472 = vmatmul.mubr.f32.gmra.mrb[0].mxu0 %v381
        %v473 = vpop.f32.mrb[0].mxu0
        %v474 = vadd.f32 %v368, %v473
        %v475 = vpop.f32.mrb[0].mxu0
        %476 = vmatprep.mubr.f32.mxu0 0.0
        %477 = vmatmul.mubr.f32.gmra.mrb[0].mxu0 %v384
        %v478 = vpop.f32.mrb[0].mxu0
        %v479 = vadd.f32 %v368, %v478
        %v480 = vpop.f32.mrb[0].mxu0
        %481 = vmatprep.mubr.f32.mxu0 0.0
        %482 = vmatmul.mubr.f32.gmra.mrb[0].mxu0 %v387
        %v483 = vpop.f32.mrb[0].mxu0
        %v484 = vadd.f32 %v368, %v483
        %v485 = vpop.f32.mrb[0].mxu0
        %486 = vmatprep.mubr.f32.mxu0 0.0
        %487 = vmatmul.mubr.f32.gmra.mrb[0].mxu0 %v390
        %v488 = vpop.f32.mrb[0].mxu0
        %v489 = vadd.f32 %v368, %v488
        %v490 = vpop.f32.mrb[0].mxu0
        %491 = vdwg.mxu0
        %v492 = vmax.f32 %v459, 0.0
        %v493 = vmax.f32 %v464, 0.0
        %v494 = vmax.f32 %v469, 0.0
        %v495 = vmax.f32 %v474, 0.0
        %v496 = vmax.f32 %v479, 0.0
        %v497 = vmax.f32 %v484, 0.0
        %v498 = vmax.f32 %v489, 0.0
        %v499 = vld [vmem:[%s3] sm:$0xff]
        %v500 = vld [vmem:[%s3 + $0x8] sm:$0xff]
        %v501 = vld [vmem:[%s3 + $0x10] sm:$0xff]
        %v502 = vld [vmem:[%s3 + $0x18] sm:$0xff]
        %v503 = vld [vmem:[%s4] sm:$0x1]
        %v505 = vlaneseq
        %v506 = vshrl.u32 %v505, 7
        %v507 = vsub.s32 0, %v506
        %v508 = vrot.slane %v503, %v507
        %vm510 = vcmask 261120
        %v512 = vsel %vm510, %v492, 0
        %v515 = vsel %vm510, %v493, 0
        %v518 = vsel %vm510, %v494, 0
        %v521 = vsel %vm510, %v495, 0
        %v524 = vsel %vm510, %v496, 0
        %v527 = vsel %vm510, %v497, 0
        %v530 = vsel %vm510, %v498, 0
        %532 = vmatprep.subr.mxu0 0.0
        %533 = vmatpush1.msra.mxu0 %v499
        %534 = vmatprep.subr.mxu0 0.0
        %535 = vmatpush1.msra.mxu0 %v500
        %536 = vmatprep.subr.mxu0 0.0
        %537 = vmatpush1.msra.mxu0 %v501
        %538 = vmatprep.subr.mxu0 0.0
        %539 = vmatpush1.msra.mxu0 %v502
        %540 = vmatprep.subr.mxu0 0.0
        %541 = vmatpush1.msra.mxu0 0.0
        %542 = vmatprep.subr.mxu0 0.0
        %543 = vmatpush1.msra.mxu0 0.0
        %544 = vmatprep.subr.mxu0 0.0
        %545 = vmatpush1.msra.mxu0 0.0
        %546 = vmatprep.subr.mxu0 0.0
        %547 = vmatpush1.msra.mxu0 0.0
        %548 = vmatprep.subr.mxu0 0.0
        %549 = vmatpush1.msra.mxu0 0.0
        %550 = vmatprep.subr.mxu0 0.0
        %551 = vmatpush1.msra.mxu0 0.0
        %552 = vmatprep.subr.mxu0 0.0
        %553 = vmatpush1.msra.mxu0 0.0
        %554 = vmatprep.subr.mxu0 0.0
        %555 = vmatpush1.msra.mxu0 0.0
        %556 = vmatprep.subr.mxu0 0.0
        %557 = vmatpush1.msra.mxu0 0.0
        %558 = vmatprep.subr.mxu0 0.0
        %559 = vmatpush1.msra.mxu0 0.0
        %560 = vmatprep.subr.mxu0 0.0
        %561 = vmatpush1.msra.mxu0 0.0
        %562 = vmatprep.subr.mxu0 0.0
        %563 = vmatpush1.msra.mxu0 0.0
        %564 = vmatprep.subr.mxu0 0.0
        %565 = vmatpush1.msra.mxu0 0.0
        %566 = vmatprep.subr.mxu0 0.0
        %567 = vmatpush1.msra.mxu0 0.0
        %568 = vmatprep.subr.mxu0 0.0
        %569 = vmatpush1.msra.mxu0 0.0
        %570 = vmatprep.subr.mxu0 0.0
        %571 = vmatpush1.msra.mxu0 0.0
        %572 = vmatprep.subr.mxu0 0.0
        %573 = vmatpush1.msra.mxu0 0.0
        %574 = vmatprep.subr.mxu0 0.0
        %575 = vmatpush1.msra.mxu0 0.0
        %576 = vmatprep.subr.mxu0 0.0
        %577 = vmatpush1.msra.mxu0 0.0
        %578 = vmatprep.subr.mxu0 0.0
        %579 = vmatpush1.msra.mxu0 0.0
        %580 = vmatprep.subr.mxu0 0.0
        %581 = vmatpush1.msra.mxu0 0.0
        %582 = vmatprep.subr.mxu0 0.0
        %583 = vmatpush1.msra.mxu0 0.0
        %584 = vmatprep.subr.mxu0 0.0
        %585 = vmatpush1.msra.mxu0 0.0
        %586 = vmatprep.subr.mxu0 0.0
        %587 = vmatpush1.msra.mxu0 0.0
        %588 = vmatprep.subr.mxu0 0.0
        %589 = vmatpush1.msra.mxu0 0.0
        %590 = vmatprep.subr.mxu0 0.0
        %591 = vmatpush1.msra.mxu0 0.0
        %592 = vmatprep.subr.mxu0 0.0
        %593 = vmatpush1.msra.mxu0 0.0
        %594 = vmatprep.subr.mxu0 0.0
        %595 = vmatpush1.msra.mxu0 0.0
        %596 = vmatprep.mubr.f32.mxu0 0.0
        %597 = vmatmul.mubr.f32.gmra.mrb[0].mxu0 %v512
        %v598 = vpop.f32.mrb[0].mxu0
        %v599 = vadd.f32 %v508, %v598
        %v600 = vpop.f32.mrb[0].mxu0
        %601 = vmatprep.mubr.f32.mxu0 0.0
        %602 = vmatmul.mubr.f32.gmra.mrb[0].mxu0 %v515
        %v603 = vpop.f32.mrb[0].mxu0
        %v604 = vadd.f32 %v508, %v603
        %v605 = vpop.f32.mrb[0].mxu0
        %606 = vmatprep.mubr.f32.mxu0 0.0
        %607 = vmatmul.mubr.f32.gmra.mrb[0].mxu0 %v518
        %v608 = vpop.f32.mrb[0].mxu0
        %v609 = vadd.f32 %v508, %v608
        %v610 = vpop.f32.mrb[0].mxu0
        %611 = vmatprep.mubr.f32.mxu0 0.0
        %612 = vmatmul.mubr.f32.gmra.mrb[0].mxu0 %v521
        %v613 = vpop.f32.mrb[0].mxu0
        %v614 = vadd.f32 %v508, %v613
        %v615 = vpop.f32.mrb[0].mxu0
        %616 = vmatprep.mubr.f32.mxu0 0.0
        %617 = vmatmul.mubr.f32.gmra.mrb[0].mxu0 %v524
        %v618 = vpop.f32.mrb[0].mxu0
        %v619 = vadd.f32 %v508, %v618
        %v620 = vpop.f32.mrb[0].mxu0
        %621 = vmatprep.mubr.f32.mxu0 0.0
        %622 = vmatmul.mubr.f32.gmra.mrb[0].mxu0 %v527
        %v623 = vpop.f32.mrb[0].mxu0
        %v624 = vadd.f32 %v508, %v623
        %v625 = vpop.f32.mrb[0].mxu0
        %626 = vmatprep.mubr.f32.mxu0 0.0
        %627 = vmatmul.mubr.f32.gmra.mrb[0].mxu0 %v530
        %v628 = vpop.f32.mrb[0].mxu0
        %v629 = vadd.f32 %v508, %v628
        %v630 = vpop.f32.mrb[0].mxu0
        %631 = vdwg.mxu0
        %v632 = vmax.f32 %v599, 0.0
        %v633 = vmax.f32 %v604, 0.0
        %v634 = vmax.f32 %v609, 0.0
        %v635 = vmax.f32 %v614, 0.0
        %v636 = vmax.f32 %v619, 0.0
        %v637 = vmax.f32 %v624, 0.0
        %v638 = vmax.f32 %v629, 0.0
        %v639 = vld [vmem:[%s5] sm:$0xff]
        %v640 = vld [vmem:[%s5 + $0x8] sm:$0xff]
        %v641 = vld [vmem:[%s5 + $0x10] sm:$0xff]
        %v642 = vld [vmem:[%s5 + $0x18] sm:$0xff]
        %v643 = vld [vmem:[%s5 + $0x20] sm:$0xff]
        %v644 = vld [vmem:[%s5 + $0x28] sm:$0xff]
        %v645 = vld [vmem:[%s5 + $0x30] sm:$0xff]
        %v646 = vld [vmem:[%s5 + $0x38] sm:$0xff]
        %v647 = vld [vmem:[%s6] sm:$0x1]
        %v649 = vlaneseq
        %v650 = vshrl.u32 %v649, 7
        %v651 = vsub.s32 0, %v650
        %v652 = vrot.slane %v647, %v651
        %vm654 = vcmask 523264
        %v656 = vsel %vm654, %v632, 0
        %v659 = vsel %vm654, %v633, 0
        %v662 = vsel %vm654, %v634, 0
        %v665 = vsel %vm654, %v635, 0
        %v668 = vsel %vm654, %v636, 0
        %v671 = vsel %vm654, %v637, 0
        %v674 = vsel %vm654, %v638, 0
        %676 = vmatprep.subr.mxu0 0.0
        %677 = vmatpush1.msra.mxu0 %v639
        %678 = vmatprep.subr.mxu0 0.0
        %679 = vmatpush1.msra.mxu0 %v640
        %680 = vmatprep.subr.mxu0 0.0
        %681 = vmatpush1.msra.mxu0 %v641
        %682 = vmatprep.subr.mxu0 0.0
        %683 = vmatpush1.msra.mxu0 %v642
        %684 = vmatprep.subr.mxu0 0.0
        %685 = vmatpush1.msra.mxu0 %v643
        %686 = vmatprep.subr.mxu0 0.0
        %687 = vmatpush1.msra.mxu0 %v644
        %688 = vmatprep.subr.mxu0 0.0
        %689 = vmatpush1.msra.mxu0 %v645
        %690 = vmatprep.subr.mxu0 0.0
        %691 = vmatpush1.msra.mxu0 %v646
        %692 = vmatprep.subr.mxu0 0.0
        %693 = vmatpush1.msra.mxu0 0.0
        %694 = vmatprep.subr.mxu0 0.0
        %695 = vmatpush1.msra.mxu0 0.0
        %696 = vmatprep.subr.mxu0 0.0
        %697 = vmatpush1.msra.mxu0 0.0
        %698 = vmatprep.subr.mxu0 0.0
        %699 = vmatpush1.msra.mxu0 0.0
        %700 = vmatprep.subr.mxu0 0.0
        %701 = vmatpush1.msra.mxu0 0.0
        %702 = vmatprep.subr.mxu0 0.0
        %703 = vmatpush1.msra.mxu0 0.0
        %704 = vmatprep.subr.mxu0 0.0
        %705 = vmatpush1.msra.mxu0 0.0
        %706 = vmatprep.subr.mxu0 0.0
        %707 = vmatpush1.msra.mxu0 0.0
        %708 = vmatprep.subr.mxu0 0.0
        %709 = vmatpush1.msra.mxu0 0.0
        %710 = vmatprep.subr.mxu0 0.0
        %711 = vmatpush1.msra.mxu0 0.0
        %712 = vmatprep.subr.mxu0 0.0
        %713 = vmatpush1.msra.mxu0 0.0
        %714 = vmatprep.subr.mxu0 0.0
        %715 = vmatpush1.msra.mxu0 0.0
        %716 = vmatprep.subr.mxu0 0.0
        %717 = vmatpush1.msra.mxu0 0.0
        %718 = vmatprep.subr.mxu0 0.0
        %719 = vmatpush1.msra.mxu0 0.0
        %720 = vmatprep.subr.mxu0 0.0
        %721 = vmatpush1.msra.mxu0 0.0
        %722 = vmatprep.subr.mxu0 0.0
        %723 = vmatpush1.msra.mxu0 0.0
        %724 = vmatprep.subr.mxu0 0.0
        %725 = vmatpush1.msra.mxu0 0.0
        %726 = vmatprep.subr.mxu0 0.0
        %727 = vmatpush1.msra.mxu0 0.0
        %728 = vmatprep.subr.mxu0 0.0
        %729 = vmatpush1.msra.mxu0 0.0
        %730 = vmatprep.subr.mxu0 0.0
        %731 = vmatpush1.msra.mxu0 0.0
        %732 = vmatprep.subr.mxu0 0.0
        %733 = vmatpush1.msra.mxu0 0.0
        %734 = vmatprep.subr.mxu0 0.0
        %735 = vmatpush1.msra.mxu0 0.0
        %736 = vmatprep.subr.mxu0 0.0
        %737 = vmatpush1.msra.mxu0 0.0
        %738 = vmatprep.subr.mxu0 0.0
        %739 = vmatpush1.msra.mxu0 0.0
        %740 = vmatprep.mubr.f32.mxu0 0.0
        %741 = vmatmul.mubr.f32.gmra.mrb[0].mxu0 %v656
        %v742 = vpop.f32.mrb[0].mxu0
        %v743 = vadd.f32 %v652, %v742
        %v744 = vpop.f32.mrb[0].mxu0
        %745 = vmatprep.mubr.f32.mxu0 0.0
        %746 = vmatmul.mubr.f32.gmra.mrb[0].mxu0 %v659
        %v747 = vpop.f32.mrb[0].mxu0
        %v748 = vadd.f32 %v652, %v747
        %v749 = vpop.f32.mrb[0].mxu0
        %750 = vmatprep.mubr.f32.mxu0 0.0
        %751 = vmatmul.mubr.f32.gmra.mrb[0].mxu0 %v662
        %v752 = vpop.f32.mrb[0].mxu0
        %v753 = vadd.f32 %v652, %v752
        %v754 = vpop.f32.mrb[0].mxu0
        %755 = vmatprep.mubr.f32.mxu0 0.0
        %756 = vmatmul.mubr.f32.gmra.mrb[0].mxu0 %v665
        %v757 = vpop.f32.mrb[0].mxu0
        %v758 = vadd.f32 %v652, %v757
        %v759 = vpop.f32.mrb[0].mxu0
        %760 = vmatprep.mubr.f32.mxu0 0.0
        %761 = vmatmul.mubr.f32.gmra.mrb[0].mxu0 %v668
        %v762 = vpop.f32.mrb[0].mxu0
        %v763 = vadd.f32 %v652, %v762
        %v764 = vpop.f32.mrb[0].mxu0
        %765 = vmatprep.mubr.f32.mxu0 0.0
        %766 = vmatmul.mubr.f32.gmra.mrb[0].mxu0 %v671
        %v767 = vpop.f32.mrb[0].mxu0
        %v768 = vadd.f32 %v652, %v767
        %v769 = vpop.f32.mrb[0].mxu0
        %770 = vmatprep.mubr.f32.mxu0 0.0
        %771 = vmatmul.mubr.f32.gmra.mrb[0].mxu0 %v674
        %v772 = vpop.f32.mrb[0].mxu0
        %v773 = vadd.f32 %v652, %v772
        %v774 = vpop.f32.mrb[0].mxu0
        %775 = vdwg.mxu0
        %v776 = vmax.f32 %v743, 0.0
        %v777 = vmax.f32 %v748, 0.0
        %v778 = vmax.f32 %v753, 0.0
        %v779 = vmax.f32 %v758, 0.0
        %v780 = vmax.f32 %v763, 0.0
        %v781 = vmax.f32 %v768, 0.0
        %v782 = vmax.f32 %v773, 0.0
        %v783 = vld [vmem:[%s7] sm:$0xff]
        %v784 = vld [vmem:[%s7 + $0x8] sm:$0xff]
        %v785 = vld [vmem:[%s7 + $0x10] sm:$0xff]
        %v786 = vld [vmem:[%s7 + $0x18] sm:$0xff]
        %v787 = vld [vmem:[%s8] sm:$0x1]
        %v789 = vlaneseq
        %v790 = vshrl.u32 %v789, 7
        %v791 = vsub.s32 0, %v790
        %v792 = vrot.slane %v787, %v791
        %v795 = vsel %vm510, %v776, 0
        %v798 = vsel %vm510, %v777, 0
        %v801 = vsel %vm510, %v778, 0
        %v804 = vsel %vm510, %v779, 0
        %v807 = vsel %vm510, %v780, 0
        %v810 = vsel %vm510, %v781, 0
        %v813 = vsel %vm510, %v782, 0
        %815 = vmatprep.subr.mxu0 0.0
        %816 = vmatpush1.msra.mxu0 %v783
        %817 = vmatprep.subr.mxu0 0.0
        %818 = vmatpush1.msra.mxu0 %v784
        %819 = vmatprep.subr.mxu0 0.0
        %820 = vmatpush1.msra.mxu0 %v785
        %821 = vmatprep.subr.mxu0 0.0
        %822 = vmatpush1.msra.mxu0 %v786
        %823 = vmatprep.subr.mxu0 0.0
        %824 = vmatpush1.msra.mxu0 0.0
        %825 = vmatprep.subr.mxu0 0.0
        %826 = vmatpush1.msra.mxu0 0.0
        %827 = vmatprep.subr.mxu0 0.0
        %828 = vmatpush1.msra.mxu0 0.0
        %829 = vmatprep.subr.mxu0 0.0
        %830 = vmatpush1.msra.mxu0 0.0
        %831 = vmatprep.subr.mxu0 0.0
        %832 = vmatpush1.msra.mxu0 0.0
        %833 = vmatprep.subr.mxu0 0.0
        %834 = vmatpush1.msra.mxu0 0.0
        %835 = vmatprep.subr.mxu0 0.0
        %836 = vmatpush1.msra.mxu0 0.0
        %837 = vmatprep.subr.mxu0 0.0
        %838 = vmatpush1.msra.mxu0 0.0
        %839 = vmatprep.subr.mxu0 0.0
        %840 = vmatpush1.msra.mxu0 0.0
        %841 = vmatprep.subr.mxu0 0.0
        %842 = vmatpush1.msra.mxu0 0.0
        %843 = vmatprep.subr.mxu0 0.0
        %844 = vmatpush1.msra.mxu0 0.0
        %845 = vmatprep.subr.mxu0 0.0
        %846 = vmatpush1.msra.mxu0 0.0
        %847 = vmatprep.subr.mxu0 0.0
        %848 = vmatpush1.msra.mxu0 0.0
        %849 = vmatprep.subr.mxu0 0.0
        %850 = vmatpush1.msra.mxu0 0.0
        %851 = vmatprep.subr.mxu0 0.0
        %852 = vmatpush1.msra.mxu0 0.0
        %853 = vmatprep.subr.mxu0 0.0
        %854 = vmatpush1.msra.mxu0 0.0
        %855 = vmatprep.subr.mxu0 0.0
        %856 = vmatpush1.msra.mxu0 0.0
        %857 = vmatprep.subr.mxu0 0.0
        %858 = vmatpush1.msra.mxu0 0.0
        %859 = vmatprep.subr.mxu0 0.0
        %860 = vmatpush1.msra.mxu0 0.0
        %861 = vmatprep.subr.mxu0 0.0
        %862 = vmatpush1.msra.mxu0 0.0
        %863 = vmatprep.subr.mxu0 0.0
        %864 = vmatpush1.msra.mxu0 0.0
        %865 = vmatprep.subr.mxu0 0.0
        %866 = vmatpush1.msra.mxu0 0.0
        %867 = vmatprep.subr.mxu0 0.0
        %868 = vmatpush1.msra.mxu0 0.0
        %869 = vmatprep.subr.mxu0 0.0
        %870 = vmatpush1.msra.mxu0 0.0
        %871 = vmatprep.subr.mxu0 0.0
        %872 = vmatpush1.msra.mxu0 0.0
        %873 = vmatprep.subr.mxu0 0.0
        %874 = vmatpush1.msra.mxu0 0.0
        %875 = vmatprep.subr.mxu0 0.0
        %876 = vmatpush1.msra.mxu0 0.0
        %877 = vmatprep.subr.mxu0 0.0
        %878 = vmatpush1.msra.mxu0 0.0
        %879 = vmatprep.mubr.f32.mxu0 0.0
        %880 = vmatmul.mubr.f32.gmra.mrb[0].mxu0 %v795
        %v881 = vpop.f32.mrb[0].mxu0
        %v882 = vadd.f32 %v792, %v881
        %v883 = vpop.f32.mrb[0].mxu0
        %884 = vmatprep.mubr.f32.mxu0 0.0
        %885 = vmatmul.mubr.f32.gmra.mrb[0].mxu0 %v798
        %v886 = vpop.f32.mrb[0].mxu0
        %v887 = vadd.f32 %v792, %v886
        %v888 = vpop.f32.mrb[0].mxu0
        %889 = vmatprep.mubr.f32.mxu0 0.0
        %890 = vmatmul.mubr.f32.gmra.mrb[0].mxu0 %v801
        %v891 = vpop.f32.mrb[0].mxu0
        %v892 = vadd.f32 %v792, %v891
        %v893 = vpop.f32.mrb[0].mxu0
        %894 = vmatprep.mubr.f32.mxu0 0.0
        %895 = vmatmul.mubr.f32.gmra.mrb[0].mxu0 %v804
        %v896 = vpop.f32.mrb[0].mxu0
        %v897 = vadd.f32 %v792, %v896
        %v898 = vpop.f32.mrb[0].mxu0
        %899 = vmatprep.mubr.f32.mxu0 0.0
        %900 = vmatmul.mubr.f32.gmra.mrb[0].mxu0 %v807
        %v901 = vpop.f32.mrb[0].mxu0
        %v902 = vadd.f32 %v792, %v901
        %v903 = vpop.f32.mrb[0].mxu0
        %904 = vmatprep.mubr.f32.mxu0 0.0
        %905 = vmatmul.mubr.f32.gmra.mrb[0].mxu0 %v810
        %v906 = vpop.f32.mrb[0].mxu0
        %v907 = vadd.f32 %v792, %v906
        %v908 = vpop.f32.mrb[0].mxu0
        %909 = vmatprep.mubr.f32.mxu0 0.0
        %910 = vmatmul.mubr.f32.gmra.mrb[0].mxu0 %v813
        %v911 = vpop.f32.mrb[0].mxu0
        %v912 = vadd.f32 %v792, %v911
        %v913 = vpop.f32.mrb[0].mxu0
        %914 = vdwg.mxu0
        %v915 = vmul.f32 %v882, %v882
        %v916 = vmul.f32 %v887, %v887
        %v917 = vmul.f32 %v892, %v892
        %v918 = vmul.f32 %v897, %v897
        %v919 = vmul.f32 %v902, %v902
        %v920 = vmul.f32 %v907, %v907
        %v921 = vmul.f32 %v912, %v912
        %vm922 = vcmask 64512
        %v923 = vsel %vm922, %v915, 0.0
        %924 = vadd.xlane.f32.xlu0 %v923
        %v925 = vpop.xlane.xlu0 %924
        %v926 = vsel %vm922, %v916, 0.0
        %927 = vadd.xlane.f32.xlu0 %v926
        %v928 = vpop.xlane.xlu0 %927
        %v929 = vsel %vm922, %v917, 0.0
        %930 = vadd.xlane.f32.xlu0 %v929
        %v931 = vpop.xlane.xlu0 %930
        %v932 = vsel %vm922, %v918, 0.0
        %933 = vadd.xlane.f32.xlu0 %v932
        %v934 = vpop.xlane.xlu0 %933
        %v935 = vsel %vm922, %v919, 0.0
        %936 = vadd.xlane.f32.xlu0 %v935
        %v937 = vpop.xlane.xlu0 %936
        %v938 = vsel %vm922, %v920, 0.0
        %939 = vadd.xlane.f32.xlu0 %v938
        %v940 = vpop.xlane.xlu0 %939
        %v941 = vsel %vm922, %v921, 0.0
        %942 = vadd.xlane.f32.xlu0 %v941
        %v943 = vpop.xlane.xlu0 %942
        %v944 = vmax.f32 %v925, 1e-24
        %v945 = vmax.f32 %v928, 1e-24
        %v946 = vmax.f32 %v931, 1e-24
        %v947 = vmax.f32 %v934, 1e-24
        %v948 = vmax.f32 %v937, 1e-24
        %v949 = vmax.f32 %v940, 1e-24
        %v950 = vmax.f32 %v943, 1e-24
        %v951 = vrsqrt.pop %v944
        %v952 = vrsqrt.pop %v945
        %v953 = vrsqrt.pop %v946
        %v954 = vrsqrt.pop %v947
        %v955 = vrsqrt.pop %v948
        %v956 = vrsqrt.pop %v949
        %v957 = vrsqrt.pop %v950
        %v958 = vmul.f32 %v882, %v951
        %v959 = vmul.f32 %v887, %v952
        %v960 = vmul.f32 %v892, %v953
        %v961 = vmul.f32 %v897, %v954
        %v962 = vmul.f32 %v902, %v955
        %v963 = vmul.f32 %v907, %v956
        %v964 = vmul.f32 %v912, %v957
        %965 = vst.msk [vmem:[%s334] sm:$0xff] %vm922, %v958
        %966 = vst.msk [vmem:[%s334 + $0x8] sm:$0xff] %vm922, %v959
        %967 = vst.msk [vmem:[%s334 + $0x10] sm:$0xff] %vm922, %v960
        %968 = vst.msk [vmem:[%s334 + $0x18] sm:$0xff] %vm922, %v961
        %969 = vst.msk [vmem:[%s334 + $0x20] sm:$0xff] %vm922, %v962
        %970 = vst.msk [vmem:[%s334 + $0x28] sm:$0xff] %vm922, %v963
        %971 = vst.msk [vmem:[%s334 + $0x30] sm:$0xff] %vm922, %v964
        %s972 = sand.u32 %s222, 1
        %s973 = sand.u32 %s222, 1
        %s974 = smul.addr %s973, 56
        %s975 = scalar_lea.vmem [#allocation2], %s974
        // Predicated region
        $region57: #{tpu_custom_call.1} parent=55 // pred_check
          %p976 = pneg %p232
        $region58: #{tpu_custom_call.1} parent=55 // pred_check_branch
          %978 = sbr.rel (%p976) target = $region60
        $region59: #{tpu_custom_call.1} parent=55 // pred_region
          %s979 = smul.u32 7, %s20
          %s980 = ssub.s32 13, %s979
          %p981 = scmp.lt.s32.totalorder %s980, 7
          %s982 = scalar_select %p981, %s980, 7
          %s983 = smul.u32 128, %s982
          %p984 = scmp.ne.s32.totalorder 0, %s983
          %s985 = smul.addr %s979, 8
          %s986 = scalar_lea.vmem %s9, %s985
          // Predicated region
          $region61: #{tpu_custom_call.1} parent=59 // pred_check
            %p987 = pneg %p984
          $region62: #{tpu_custom_call.1} parent=59 // pred_check_branch
            %989 = sbr.rel (%p987) target = $region64
          $region63: #{tpu_custom_call.1} parent=59 // pred_region
            // Predicated region
            $region65: #{tpu_custom_call.1} parent=63 // pred_check
              _
            $region66: #{tpu_custom_call.1} parent=63 // pred_check_branch
              %991 = sbr.rel (0) target = $region68
            $region67: #{tpu_custom_call.1} parent=63 // pred_region
              // Predicated region
              $region87: #{tpu_custom_call.1} parent=67 // pred_check
                _
              $region88: #{tpu_custom_call.1} parent=67 // pred_check_branch
                %1053 = sbr.rel (0) target = $region90
              $region89: #{tpu_custom_call.1} parent=67 // pred_region
                %s1054 = sdiv.u32.pop %s982, 7
                %s1055 = srem.u32.pop %s982, 7
                // While loop
                $region91: #{tpu_custom_call.1} parent=89 // loop_pre_header
                  _
                $region92: #{tpu_custom_call.1} parent=89 // loop_header
                  %s1057 = sphi 0, %s1059
                  %p1058 = scmp.ge.s32.totalorder %s1057, %s1054
                  %s1062 = sphi 0, %s1081
                  %s1063 = sphi %s975, %s1084
                  %s1064 = sphi %s986, %s1085
                $region93: #{tpu_custom_call.1} parent=89 // loop_header_branch
                  %1061 = sbr.rel (%p1058) target = $region97
                $region94: #{tpu_custom_call.1} parent=89 // loop_body
                  %v1065 = vld [vmem:[%s1063] sm:$0xff]
                  %1066 = vst [vmem:[%s1064] sm:$0xff] %v1065
                  %v1067 = vld [vmem:[%s1063 + $0x8] sm:$0xff]
                  %1068 = vst [vmem:[%s1064 + $0x8] sm:$0xff] %v1067
                  %v1069 = vld [vmem:[%s1063 + $0x10] sm:$0xff]
                  %1070 = vst [vmem:[%s1064 + $0x10] sm:$0xff] %v1069
                  %v1071 = vld [vmem:[%s1063 + $0x18] sm:$0xff]
                  %1072 = vst [vmem:[%s1064 + $0x18] sm:$0xff] %v1071
                  %v1073 = vld [vmem:[%s1063 + $0x20] sm:$0xff]
                  %1074 = vst [vmem:[%s1064 + $0x20] sm:$0xff] %v1073
                  %v1075 = vld [vmem:[%s1063 + $0x28] sm:$0xff]
                  %1076 = vst [vmem:[%s1064 + $0x28] sm:$0xff] %v1075
                  %v1077 = vld [vmem:[%s1063 + $0x30] sm:$0xff]
                  %1078 = vst [vmem:[%s1064 + $0x30] sm:$0xff] %v1077
                  %s1079 = sadd.s32 1, %s1062
                  %p1080 = scmp.ge.s32.totalorder %s1079, %s1054
                  %s1081 = scalar_select %p1080, 0, %s1079
                  %s1082 = smul.u32 %s1081, 56
                  %s1083 = smul.u32 %s1081, 56
                  %s1084 = scalar_lea.vmem %s975, %s1082 [#allocation2]
                  %s1085 = scalar_lea.vmem %s986, %s1083
                $region95: #{tpu_custom_call.1} parent=89 // loop_footer
                  %s1059 = sadd.s32 %s1057, 1
                $region96: #{tpu_custom_call.1} parent=89 // loop_footer_branch
                  %1056 = sbr.rel target = $region92
                $region97: #{tpu_custom_call.1} parent=89 // loop_exit
                  _
                %s1086 = sdiv.u32.pop %s982, 7
                %s1087 = srem.u32.pop %s982, 7
                %s1088 = smul.u32 %s1086, 7
                %s1089 = smul.u32 8, %s1088
                %s1090 = scalar_lea.vmem %s975, %s1089 [#allocation2]
                %s1091 = smul.u32 8, %s1088
                %s1092 = scalar_lea.vmem %s986, %s1091
                // While loop
                $region98: #{tpu_custom_call.1} parent=89 // loop_pre_header
                  _
                $region99: #{tpu_custom_call.1} parent=89 // loop_header
                  %s1094 = sphi 0, %s1096
                  %p1095 = scmp.ge.s32.totalorder %s1094, %s1087
                  %s1099 = sphi 0, %s1106
                  %s1100 = sphi %s1090, %s1109
                  %s1101 = sphi %s1092, %s1110
                $region100: #{tpu_custom_call.1} parent=89 // loop_header_branch
                  %1098 = sbr.rel (%p1095) target = $region104
                $region101: #{tpu_custom_call.1} parent=89 // loop_body
                  %v1102 = vld [vmem:[%s1100] sm:$0xff]
                  %1103 = vst [vmem:[%s1101] sm:$0xff] %v1102
                  %s1104 = sadd.s32 1, %s1099
                  %p1105 = scmp.ge.s32.totalorder %s1104, %s1087
                  %s1106 = scalar_select %p1105, 0, %s1104
                  %s1107 = smul.u32 %s1106, 8
                  %s1108 = smul.u32 %s1106, 8
                  %s1109 = scalar_lea.vmem %s1090, %s1107 [#allocation2]
                  %s1110 = scalar_lea.vmem %s1092, %s1108
                $region102: #{tpu_custom_call.1} parent=89 // loop_footer
                  %s1096 = sadd.s32 %s1094, 1
                $region103: #{tpu_custom_call.1} parent=89 // loop_footer_branch
                  %1093 = sbr.rel target = $region99
                $region104: #{tpu_custom_call.1} parent=89 // loop_exit
                  _
              $region90: #{tpu_custom_call.1} parent=67 // pred_fallthru
                _
              // Predicated region
              $region105: #{tpu_custom_call.1} parent=67 // pred_check
                _
              $region106: #{tpu_custom_call.1} parent=67 // pred_check_branch
                %1112 = sbr.rel target = $region108
              $region107: #{tpu_custom_call.1} parent=67 // pred_region
                _
              $region108: #{tpu_custom_call.1} parent=67 // pred_fallthru
                _
            $region68: #{tpu_custom_call.1} parent=63 // pred_fallthru
              _
            // Predicated region
            $region69: #{tpu_custom_call.1} parent=63 // pred_check
              _
            $region70: #{tpu_custom_call.1} parent=63 // pred_check_branch
              %993 = sbr.rel target = $region72
            $region71: #{tpu_custom_call.1} parent=63 // pred_region
              %s995 = sdiv.u32.pop %s982, 7
              %s996 = srem.u32.pop %s982, 7
              // While loop
              $region73: #{tpu_custom_call.1} parent=71 // loop_pre_header
                _
              $region74: #{tpu_custom_call.1} parent=71 // loop_header
                %s998 = sphi 0, %s1000
                %p999 = scmp.ge.s32.totalorder %s998, %s995
                %s1003 = sphi 0, %s1022
                %s1004 = sphi %s975, %s1025
                %s1005 = sphi %s986, %s1026
              $region75: #{tpu_custom_call.1} parent=71 // loop_header_branch
                %1002 = sbr.rel (%p999) target = $region79
              $region76: #{tpu_custom_call.1} parent=71 // loop_body
                %v1006 = vld [vmem:[%s1004] sm:$0xff]
                %1007 = vst [vmem:[%s1005] sm:$0xff] %v1006
                %v1008 = vld [vmem:[%s1004 + $0x8] sm:$0xff]
                %1009 = vst [vmem:[%s1005 + $0x8] sm:$0xff] %v1008
                %v1010 = vld [vmem:[%s1004 + $0x10] sm:$0xff]
                %1011 = vst [vmem:[%s1005 + $0x10] sm:$0xff] %v1010
                %v1012 = vld [vmem:[%s1004 + $0x18] sm:$0xff]
                %1013 = vst [vmem:[%s1005 + $0x18] sm:$0xff] %v1012
                %v1014 = vld [vmem:[%s1004 + $0x20] sm:$0xff]
                %1015 = vst [vmem:[%s1005 + $0x20] sm:$0xff] %v1014
                %v1016 = vld [vmem:[%s1004 + $0x28] sm:$0xff]
                %1017 = vst [vmem:[%s1005 + $0x28] sm:$0xff] %v1016
                %v1018 = vld [vmem:[%s1004 + $0x30] sm:$0xff]
                %1019 = vst [vmem:[%s1005 + $0x30] sm:$0xff] %v1018
                %s1020 = sadd.s32 1, %s1003
                %p1021 = scmp.ge.s32.totalorder %s1020, %s995
                %s1022 = scalar_select %p1021, 0, %s1020
                %s1023 = smul.u32 %s1022, 56
                %s1024 = smul.u32 %s1022, 56
                %s1025 = scalar_lea.vmem %s975, %s1023 [#allocation2]
                %s1026 = scalar_lea.vmem %s986, %s1024
              $region77: #{tpu_custom_call.1} parent=71 // loop_footer
                %s1000 = sadd.s32 %s998, 1
              $region78: #{tpu_custom_call.1} parent=71 // loop_footer_branch
                %997 = sbr.rel target = $region74
              $region79: #{tpu_custom_call.1} parent=71 // loop_exit
                _
              %s1027 = sdiv.u32.pop %s982, 7
              %s1028 = srem.u32.pop %s982, 7
              %s1029 = smul.u32 %s1027, 7
              %s1030 = smul.u32 8, %s1029
              %s1031 = scalar_lea.vmem %s975, %s1030 [#allocation2]
              %s1032 = smul.u32 8, %s1029
              %s1033 = scalar_lea.vmem %s986, %s1032
              // While loop
              $region80: #{tpu_custom_call.1} parent=71 // loop_pre_header
                _
              $region81: #{tpu_custom_call.1} parent=71 // loop_header
                %s1035 = sphi 0, %s1037
                %p1036 = scmp.ge.s32.totalorder %s1035, %s1028
                %s1040 = sphi 0, %s1047
                %s1041 = sphi %s1031, %s1050
                %s1042 = sphi %s1033, %s1051
              $region82: #{tpu_custom_call.1} parent=71 // loop_header_branch
                %1039 = sbr.rel (%p1036) target = $region86
              $region83: #{tpu_custom_call.1} parent=71 // loop_body
                %v1043 = vld [vmem:[%s1041] sm:$0xff]
                %1044 = vst [vmem:[%s1042] sm:$0xff] %v1043
                %s1045 = sadd.s32 1, %s1040
                %p1046 = scmp.ge.s32.totalorder %s1045, %s1028
                %s1047 = scalar_select %p1046, 0, %s1045
                %s1048 = smul.u32 %s1047, 8
                %s1049 = smul.u32 %s1047, 8
                %s1050 = scalar_lea.vmem %s1031, %s1048 [#allocation2]
                %s1051 = scalar_lea.vmem %s1033, %s1049
              $region84: #{tpu_custom_call.1} parent=71 // loop_footer
                %s1037 = sadd.s32 %s1035, 1
              $region85: #{tpu_custom_call.1} parent=71 // loop_footer_branch
                %1034 = sbr.rel target = $region81
              $region86: #{tpu_custom_call.1} parent=71 // loop_exit
                _
            $region72: #{tpu_custom_call.1} parent=63 // pred_fallthru
              _
          $region64: #{tpu_custom_call.1} parent=59 // pred_fallthru
            _
          %1113 = vnop
        $region60: #{tpu_custom_call.1} parent=55 // pred_fallthru
          _
      $region56: #{tpu_custom_call.1} parent=5 // pred_fallthru
        _
      %p1114 = scmp.le.s32.totalorder 2, %s15
      // Predicated region
      $region109: #{tpu_custom_call.1} parent=5 // pred_check
        %p1115 = pneg %p1114
      $region110: #{tpu_custom_call.1} parent=5 // pred_check_branch
        %1117 = sbr.rel (%p1115) target = $region112
      $region111: #{tpu_custom_call.1} parent=5 // pred_region
        %s1118 = ssub.s32 %s15, 2
        // Predicated region
        $region113: #{tpu_custom_call.1} parent=111 // pred_check
          %p1119 = pneg %p238
        $region114: #{tpu_custom_call.1} parent=111 // pred_check_branch
          %1121 = sbr.rel (%p1119) target = $region116
        $region115: #{tpu_custom_call.1} parent=111 // pred_region
          %s1122 = sand.u32 %s223, 1
          %s1123 = sand.u32 %s223, 1
          %s1124 = smul.addr %s1123, 56
          %s1125 = scalar_lea.vmem [#allocation2], %s1124
        $region116: #{tpu_custom_call.1} parent=111 // pred_fallthru
          _
      $region112: #{tpu_custom_call.1} parent=5 // pred_fallthru
        _
    $region6: #{tpu_custom_call.1} parent=1 // loop_footer
      %s19 = sadd.s32 1, %s15
    $region7: #{tpu_custom_call.1} parent=1 // loop_footer_branch
      %14 = sbr.rel target = $region3
    $region8: #{tpu_custom_call.1} parent=1 // loop_exit
      _

</llo_original>
